<compile_context>
chip_gen: v6e
topology: v6e:2x2x1
jax: 0.10.0
libtpu: 0.0.40
codegen_flags: <defaults>
</compile_context>

<pallas_src>
import functools

import jax
import jax.numpy as jnp
import numpy as np
from jax.experimental import pallas as pl
from jax.experimental.pallas import tpu as pltpu

# ----------------- configuration (plays the role of `arguments` / `design`) -----------
N_QUBITS = 4
N_LAYERS = 6
D = 2 ** N_QUBITS          # statevector dimension
Q = N_QUBITS               # number of PauliZ expectation outputs

# design[0][i], design[1][i] : IsingZZ wire pair   (design[0][i] == N_QUBITS -> not a ZZ layer)
# design[2][i]               : single-qubit wire    (== N_QUBITS -> skip)
# design[3][i]               : axis code 1=X, 2=Y, 3=Z (Z uses the *input* Rot angles)
DESIGN = [
    [0,        2,        N_QUBITS, N_QUBITS, N_QUBITS, 1       ],
    [1,        3,        0,        0,        0,        2       ],
    [N_QUBITS, N_QUBITS, 1,        2,        3,        N_QUBITS],
    [0,        0,        1,        2,        3,        0       ],
]

# Locate the single data-dependent design layer (axis==3 -> Rot with the *input* angles) and
# verify every later layer is a diagonal IsingZZ (or a no-op), so it can be dropped before
# |psi|^2.  Both facts are static properties of DESIGN.
_DYN = [i for i in range(N_LAYERS)
        if DESIGN[0][i] == N_QUBITS and DESIGN[2][i] != N_QUBITS and DESIGN[3][i] == 3]
assert len(_DYN) == 1, "kernel specialization expects exactly one input-dependent layer"
DYN_LAYER = _DYN[0]
for _i in range(DYN_LAYER + 1, N_LAYERS):
    assert DESIGN[0][_i] != N_QUBITS or DESIGN[2][_i] == N_QUBITS, \
        "layers after the input-dependent one must be diagonal (ZZ) or no-ops"
W_DYN = DESIGN[2][DYN_LAYER]
# TODO(synk): generalize to designs with multiple (or zero) input-dependent layers / a
# non-diagonal trailing gate; that needs extra streamed per-element blocks or a fallback to
# the dense gate-stream kernel.


# ----------------- gate construction helpers (plain JAX, host-side "circuit compile") ---
def kron2(a, b):
    ra, ca = a.shape
    rb, cb = b.shape
    return (a[:, None, :, None] * b[None, :, None, :]).reshape(ra * rb, ca * cb)


def rot2(phi, theta, omega):
    # PennyLane Rot = RZ(omega) RY(theta) RZ(phi)
    c = jnp.cos(theta / 2)
    s = jnp.sin(theta / 2)
    m00 = jnp.exp(-0.5j * (phi + omega)) * c
    m01 = -jnp.exp(0.5j * (phi - omega)) * s
    m10 = jnp.exp(-0.5j * (phi - omega)) * s
    m11 = jnp.exp(0.5j * (phi + omega)) * c
    return jnp.stack([jnp.stack([m00, m01]), jnp.stack([m10, m11])]).astype(jnp.complex64)


def rx2(a):
    c = jnp.cos(a / 2).astype(jnp.complex64)
    s = jnp.sin(a / 2).astype(jnp.complex64)
    return jnp.stack([jnp.stack([c, -1j * s]), jnp.stack([-1j * s, c])])


def ry2(a):
    c = jnp.cos(a / 2).astype(jnp.complex64)
    s = jnp.sin(a / 2).astype(jnp.complex64)
    return jnp.stack([jnp.stack([c, -s]), jnp.stack([s, c])])


def embed_1q(u2, wire):
    left = jnp.eye(2 ** wire, dtype=jnp.complex64)
    right = jnp.eye(2 ** (N_QUBITS - 1 - wire), dtype=jnp.complex64)
    return kron2(kron2(left, u2), right)


def zz_full(angle, w0, w1):
    k = jnp.arange(D)
    z0 = 1 - 2 * ((k >> (N_QUBITS - 1 - w0)) & 1)
    z1 = 1 - 2 * ((k >> (N_QUBITS - 1 - w1)) & 1)
    phase = jnp.exp(-0.5j * angle * (z0 * z1).astype(jnp.float32))
    return phase[:, None] * jnp.eye(D, dtype=jnp.complex64)


def _shared_pre_gate(i, params):
    """Gate for params-only design layer i (never the input-dependent one)."""
    angle = params[i]
    if DESIGN[0][i] != N_QUBITS:
        return zz_full(angle, DESIGN[0][i], DESIGN[1][i])
    if DESIGN[2][i] != N_QUBITS:
        w, axis = DESIGN[2][i], DESIGN[3][i]
        if axis == 1:
            return embed_1q(rx2(angle), w)
        if axis == 2:
            return embed_1q(ry2(angle), w)
        return jnp.eye(D, dtype=jnp.complex64)   # "Wrong gate" -> no-op
    return jnp.eye(D, dtype=jnp.complex64)       # layer applies nothing


def build_shared_matrix(params):
    """All batch-invariant gates between the encoding layer and the data-dependent Rot,
    composed into one matrix, real-embedded, and stacked with its pair-swap-permuted copy:
        S = [[A_emb], [P_emb @ A_emb]]   -> (4D, 2D) float32
    so one MXU dot per tile yields both A@psi0 and P@A@psi0 (the Rot partner amplitudes)."""
    A = jnp.eye(D, dtype=jnp.complex64)
    for i in range(DYN_LAYER):
        A = _shared_pre_gate(i, params) @ A
    ar = jnp.real(A).astype(jnp.float32)
    ai = jnp.imag(A).astype(jnp.float32)
    a_emb = jnp.concatenate([jnp.concatenate([ar, -ai], axis=1),
                             jnp.concatenate([ai, ar], axis=1)], axis=0)      # (2D, 2D)
    # fixed pair-swap permutation for the dynamic wire (swap basis states in that bit)
    bit = N_QUBITS - 1 - W_DYN
    perm = np.arange(D) ^ (1 << bit)
    p = np.zeros((D, D), np.float32)
    p[np.arange(D), perm] = 1.0
    p_emb = np.zeros((2 * D, 2 * D), np.float32)
    p_emb[:D, :D] = p
    p_emb[D:, D:] = p
    return jnp.concatenate([a_emb, jnp.asarray(p_emb) @ a_emb], axis=0)       # (4D, 2D)


def per_elem_features(elem):
    """Per-element data-dependent stream (96 f32 = 384 B):
       [Re psi0 (D), Im psi0 (D), Re diag (D), Im diag (D), Re offd (D), Im offd (D)]
    psi0 = encoding layer applied to |0..0> (= kron of the Rot first columns);
    diag/offd are the 2x2 data-dependent Rot coefficients spread over basis indices."""
    angles = elem.reshape(N_QUBITS, 3).astype(jnp.float32)
    cols = [rot2(angles[q, 0], angles[q, 1], angles[q, 2])[:, 0] for q in range(N_QUBITS)]
    psi0 = functools.reduce(jnp.kron, cols)                 # (D,) complex, wire 0 = MSB
    u = rot2(angles[W_DYN, 0], angles[W_DYN, 1], angles[W_DYN, 2])   # (2,2) complex
    b = (jnp.arange(D) >> (N_QUBITS - 1 - W_DYN)) & 1        # dynamic wire's bit per index
    diag = u[b, b]
    offd = u[b, 1 - b]
    return jnp.concatenate([jnp.real(psi0), jnp.imag(psi0),
                            jnp.real(diag), jnp.imag(diag),
                            jnp.real(offd), jnp.imag(offd)]).astype(jnp.float32)   # (6D,)


# ----------------- Pallas kernel ------------------------------------------------------
def vqc_kernel(feat_ref, smat_ref, out_ref):
    # feat_ref : (6D, TB) f32 -- per-element data, batch on the 128-wide lane axis:
    #   rows 0:2D   [Re;Im] of psi0 (encoding gate applied to |0..0>)
    #   rows 2D:4D  [Re;Im] of the data-dependent Rot diag coefficient  u[b,b]
    #   rows 4D:6D  [Re;Im] of the data-dependent Rot offdiag coeff     u[b,1-b]
    # smat_ref : (4D, 2D) f32 -- [A_emb ; P_emb @ A_emb], shared & resident across the grid
    # out_ref  : (Q, TB)  f32 -- PauliZ expectations, lane-dense over the batch
    feat = feat_ref[...]

    # shared gates + partner permutation in ONE MXU dot (vex slot; VPU stays free)
    big = jnp.dot(smat_ref[...], feat[0:2 * D, :],
                  preferred_element_type=jnp.float32)          # (4D, TB)
    pr, pi = big[0:D, :], big[D:2 * D, :]                      # psi1 = A @ psi0
    qr, qi = big[2 * D:3 * D, :], big[3 * D:4 * D, :]          # P @ psi1 (pair-swapped)

    dr, di = feat[2 * D:3 * D, :], feat[3 * D:4 * D, :]
    fr_, fi_ = feat[4 * D:5 * D, :], feat[5 * D:6 * D, :]

    # data-dependent single-qubit Rot: psi2 = diag*psi1 + offd*(P psi1)   (complex, per lane)
    re = dr * pr - di * pi + fr_ * qr - fi_ * qi
    im = dr * pi + di * pr + fr_ * qi + fi_ * qr
    # trailing diagonal ZZ dropped (pure phase before |psi|^2)
    probs = re * re + im * im                                  # (D, TB)

    # PauliZ sign table built from iota (no DMA): signs[q, j] = 1 - 2*bit_{N-1-q}(j)
    j_idx = jax.lax.broadcasted_iota(jnp.int32, (Q, D), 1)
    q_idx = jax.lax.broadcasted_iota(jnp.int32, (Q, D), 0)
    signs = jnp.zeros((Q, D), dtype=jnp.float32)
    for q in range(Q):                                         # static shifts only
        sq = 1.0 - 2.0 * ((j_idx >> (N_QUBITS - 1 - q)) & 1).astype(jnp.float32)
        signs = jnp.where(q_idx == q, sq, signs)

    out_ref[...] = jnp.dot(signs, probs, preferred_element_type=jnp.float32)   # (Q, TB)


# ----------------- wrapper -------------------------------------------------------------
@functools.partial(jax.jit, static_argnames=("tb",))
def quantum_layer_forward(x, params, tb=256):
    """x: (B, 3*N_QUBITS) float32, params: (N_LAYERS,) float32 -> (B, N_QUBITS) float32."""
    B = x.shape[0]
    TB = int(min(tb, B))                 # batch tile = lane width inside the kernel
    NT = -(-B // TB)                     # grid steps
    B_pad = NT * TB

    # batch-invariant "compiled circuit" matrix (tiny, resident in VMEM for the whole grid)
    smat = build_shared_matrix(params)                                  # (4D, 2D) f32

    # per-element stream built directly batch-last (lane-dense), 384 B/elem
    feat = jax.vmap(per_elem_features, out_axes=-1)(x)                  # (6D, B)
    if B_pad != B:
        feat = jnp.pad(feat, ((0, 0), (0, B_pad - B)))                  # padded lanes -> 0
    feat = feat.reshape(6 * D, NT, TB).transpose(1, 0, 2)               # (NT, 6D, TB)

    flops = B_pad * (2 * (4 * D) * (2 * D) + 17 * D + 2 * Q * D)
    bytes_acc = B_pad * 6 * D * 4 + (4 * D) * (2 * D) * 4 + B_pad * Q * 4
    cost = pl.CostEstimate(flops=int(flops), transcendentals=0, bytes_accessed=int(bytes_acc))

    out = pl.pallas_call(
        vqc_kernel,
        out_shape=jax.ShapeDtypeStruct((NT, Q, TB), jnp.float32),
        grid_spec=pltpu.PrefetchScalarGridSpec(
            num_scalar_prefetch=0,
            grid=(NT,),
            in_specs=[
                # per-element stream: one small lane-dense block per grid step
                pl.BlockSpec((None, 6 * D, TB), lambda t: (t, 0, 0)),
                # shared compiled-circuit matrix: same block every step -> stays resident
                pl.BlockSpec((4 * D, 2 * D), lambda t: (0, 0)),
            ],
            out_specs=pl.BlockSpec((None, Q, TB), lambda t: (t, 0, 0)),
        ),
        compiler_params=pltpu.CompilerParams(dimension_semantics=("parallel",)),
        cost_estimate=cost,
    )(feat, smat)

    out = jnp.transpose(out, (0, 2, 1)).reshape(B_pad, Q)
    return out[:B]


# ----------------- pure-JAX reference (builds the FULL gate stack, including the gates ----
# ----------------- the kernel folds/drops, so it validates the dedup) ---------------------
def build_gate_stack(elem, params):
    angles = elem.reshape(N_QUBITS, 3).astype(jnp.float32)
    rots = [rot2(angles[i, 0], angles[i, 1], angles[i, 2]) for i in range(N_QUBITS)]
    enc = functools.reduce(kron2, rots)      # wire 0 = most-significant qubit (PennyLane order)
    gates = [enc]
    for i in range(N_LAYERS):
        angle = params[i]
        if DESIGN[0][i] != N_QUBITS:
            gates.append(zz_full(angle, DESIGN[0][i], DESIGN[1][i]))
        elif DESIGN[2][i] != N_QUBITS:
            w, axis = DESIGN[2][i], DESIGN[3][i]
            if axis == 1:
                gates.append(embed_1q(rx2(angle), w))
            elif axis == 2:
                gates.append(embed_1q(ry2(angle), w))
            elif axis == 3:
                gates.append(embed_1q(rot2(angles[w, 0], angles[w, 1], angles[w, 2]), w))
            else:
                gates.append(jnp.eye(D, dtype=jnp.complex64))
        else:
            gates.append(jnp.eye(D, dtype=jnp.complex64))
    return jnp.stack(gates).astype(jnp.complex64)


def pauli_z_table():
    k = jnp.arange(D)[:, None]
    q = jnp.arange(Q)[None, :]
    return (1 - 2 * ((k >> (N_QUBITS - 1 - q)) & 1)).astype(jnp.float32)      # (D, Q)


def reference_forward(x, params):
    pauli = pauli_z_table()

    def one(elem):
        gates = build_gate_stack(elem, params)
        psi = jnp.zeros((D,), jnp.complex64).at[0].set(1.0 + 0.0j)
        for g in range(1 + N_LAYERS):
            psi = gates[g] @ psi
        probs = jnp.real(psi * jnp.conj(psi)).astype(jnp.float32)
        return probs @ pauli

    return jax.vmap(one)(x)


if __name__ == "__main__":
    key = jax.random.PRNGKey(0)
    kx, kp = jax.random.split(key)
    B = 1024                         # TB=256 -> 4 grid steps (>=2 per v7x TensorCore)
    x = jax.random.normal(kx, (B, 3 * N_QUBITS), dtype=jnp.float32)
    # nn.Parameter(torch.randn(num_layers)) -> deterministic synthetic init
    params = jax.random.normal(kp, (N_LAYERS,), dtype=jnp.float32)

    out = quantum_layer_forward(x, params)
    out = jax.block_until_ready(out)
    assert out.shape == (B, N_QUBITS) and out.dtype == jnp.float32

    ref = jax.jit(reference_forward)(x, params)
    np.testing.assert_allclose(np.asarray(out), np.asarray(ref), atol=3e-4, rtol=1e-3)
    print("KERNEL_OK")
</pallas_src>

<mosaic_0001>
module attributes {stable_mosaic.version = 11 : i64} {
  func.func @vqc_kernel(%arg0: i32, %arg1: memref<1x96x256xf32, #tpu.memory_space<vmem>>, %arg2: memref<64x32xf32, #tpu.memory_space<vmem>>, %arg3: memref<1x4x256xf32, #tpu.memory_space<vmem>>) attributes {dimension_semantics = [#tpu.dimension_semantics<parallel>], iteration_bounds = array<i64: 4>, scalar_prefetch = 0 : i64, scratch_operands = 0 : i64, tpu.core_type = #tpu.core_type<tc>, window_params = [{transform_indices = @transform_0, window_bounds = array<i64: 1, 96, 256>}, {pipeline_mode = #tpu.pipeline_mode<synchronous>, transform_indices = @transform_1, window_bounds = array<i64: 64, 32>}, {transform_indices = @transform_2, window_bounds = array<i64: 1, 4, 256>}]} {
    %c0 = arith.constant 0 : index
    %c0_0 = arith.constant 0 : index
    %c0_1 = arith.constant 0 : index
    %0 = vector.load %arg1[%c0, %c0_0, %c0_1] : memref<1x96x256xf32, #tpu.memory_space<vmem>>, vector<1x96x256xf32>
    %1 = vector.shape_cast %0 : vector<1x96x256xf32> to vector<96x256xf32>
    %c0_2 = arith.constant 0 : index
    %c0_3 = arith.constant 0 : index
    %2 = vector.load %arg2[%c0_2, %c0_3] : memref<64x32xf32, #tpu.memory_space<vmem>>, vector<64x32xf32>
    %3 = vector.extract_strided_slice %1 {offsets = [0, 0], sizes = [32, 256], strides = [1, 1]} : vector<96x256xf32> to vector<32x256xf32>
    %cst = arith.constant dense<0.000000e+00> : vector<64x256xf32>
    %4 = tpu.matmul %2, %3, %cst {dimension_numbers = #tpu.dot_dimension_numbers<[1], [0], [0], [1], [0, 0, 1, 1], [], []>} : vector<64x32xf32>, vector<32x256xf32>, vector<64x256xf32> -> vector<64x256xf32>
    %5 = vector.extract_strided_slice %4 {offsets = [0, 0], sizes = [16, 256], strides = [1, 1]} : vector<64x256xf32> to vector<16x256xf32>
    %6 = vector.extract_strided_slice %4 {offsets = [16, 0], sizes = [16, 256], strides = [1, 1]} : vector<64x256xf32> to vector<16x256xf32>
    %7 = vector.extract_strided_slice %4 {offsets = [32, 0], sizes = [16, 256], strides = [1, 1]} : vector<64x256xf32> to vector<16x256xf32>
    %8 = vector.extract_strided_slice %4 {offsets = [48, 0], sizes = [16, 256], strides = [1, 1]} : vector<64x256xf32> to vector<16x256xf32>
    %9 = vector.extract_strided_slice %1 {offsets = [32, 0], sizes = [16, 256], strides = [1, 1]} : vector<96x256xf32> to vector<16x256xf32>
    %10 = vector.extract_strided_slice %1 {offsets = [48, 0], sizes = [16, 256], strides = [1, 1]} : vector<96x256xf32> to vector<16x256xf32>
    %11 = vector.extract_strided_slice %1 {offsets = [64, 0], sizes = [16, 256], strides = [1, 1]} : vector<96x256xf32> to vector<16x256xf32>
    %12 = vector.extract_strided_slice %1 {offsets = [80, 0], sizes = [16, 256], strides = [1, 1]} : vector<96x256xf32> to vector<16x256xf32>
    %13 = arith.mulf %9, %5 : vector<16x256xf32>
    %14 = arith.mulf %10, %6 : vector<16x256xf32>
    %15 = arith.subf %13, %14 : vector<16x256xf32>
    %16 = arith.mulf %11, %7 : vector<16x256xf32>
    %17 = arith.addf %15, %16 : vector<16x256xf32>
    %18 = arith.mulf %12, %8 : vector<16x256xf32>
    %19 = arith.subf %17, %18 : vector<16x256xf32>
    %20 = arith.mulf %9, %6 : vector<16x256xf32>
    %21 = arith.mulf %10, %5 : vector<16x256xf32>
    %22 = arith.addf %20, %21 : vector<16x256xf32>
    %23 = arith.mulf %11, %8 : vector<16x256xf32>
    %24 = arith.addf %22, %23 : vector<16x256xf32>
    %25 = arith.mulf %12, %7 : vector<16x256xf32>
    %26 = arith.addf %24, %25 : vector<16x256xf32>
    %27 = arith.mulf %19, %19 : vector<16x256xf32>
    %28 = arith.mulf %26, %26 : vector<16x256xf32>
    %29 = arith.addf %27, %28 : vector<16x256xf32>
    %30 = tpu.iota {dimensions = array<i32: 1>} : vector<4x16xi32>
    %31 = tpu.iota {dimensions = array<i32: 0>} : vector<4x16xi32>
    %cst_4 = arith.constant 0.000000e+00 : f32
    %32 = vector.broadcast %cst_4 : f32 to vector<4x16xf32>
    %c3_i32 = arith.constant 3 : i32
    %33 = vector.broadcast %c3_i32 : i32 to vector<4x16xi32>
    %34 = arith.shrsi %30, %33 : vector<4x16xi32>
    %c1_i32 = arith.constant 1 : i32
    %35 = vector.broadcast %c1_i32 : i32 to vector<4x16xi32>
    %36 = arith.andi %34, %35 : vector<4x16xi32>
    %37 = arith.sitofp %36 : vector<4x16xi32> to vector<4x16xf32>
    %cst_5 = arith.constant 2.000000e+00 : f32
    %38 = vector.broadcast %cst_5 : f32 to vector<4x16xf32>
    %39 = arith.mulf %38, %37 : vector<4x16xf32>
    %cst_6 = arith.constant 1.000000e+00 : f32
    %40 = vector.broadcast %cst_6 : f32 to vector<4x16xf32>
    %41 = arith.subf %40, %39 : vector<4x16xf32>
    %c0_i32 = arith.constant 0 : i32
    %42 = vector.broadcast %c0_i32 : i32 to vector<4x16xi32>
    %43 = arith.cmpi eq, %31, %42 : vector<4x16xi32>
    %44 = arith.select %43, %41, %32 : vector<4x16xi1>, vector<4x16xf32>
    %c2_i32 = arith.constant 2 : i32
    %45 = vector.broadcast %c2_i32 : i32 to vector<4x16xi32>
    %46 = arith.shrsi %30, %45 : vector<4x16xi32>
    %c1_i32_7 = arith.constant 1 : i32
    %47 = vector.broadcast %c1_i32_7 : i32 to vector<4x16xi32>
    %48 = arith.andi %46, %47 : vector<4x16xi32>
    %49 = arith.sitofp %48 : vector<4x16xi32> to vector<4x16xf32>
    %cst_8 = arith.constant 2.000000e+00 : f32
    %50 = vector.broadcast %cst_8 : f32 to vector<4x16xf32>
    %51 = arith.mulf %50, %49 : vector<4x16xf32>
    %cst_9 = arith.constant 1.000000e+00 : f32
    %52 = vector.broadcast %cst_9 : f32 to vector<4x16xf32>
    %53 = arith.subf %52, %51 : vector<4x16xf32>
    %c1_i32_10 = arith.constant 1 : i32
    %54 = vector.broadcast %c1_i32_10 : i32 to vector<4x16xi32>
    %55 = arith.cmpi eq, %31, %54 : vector<4x16xi32>
    %56 = arith.select %55, %53, %44 : vector<4x16xi1>, vector<4x16xf32>
    %c1_i32_11 = arith.constant 1 : i32
    %57 = vector.broadcast %c1_i32_11 : i32 to vector<4x16xi32>
    %58 = arith.shrsi %30, %57 : vector<4x16xi32>
    %c1_i32_12 = arith.constant 1 : i32
    %59 = vector.broadcast %c1_i32_12 : i32 to vector<4x16xi32>
    %60 = arith.andi %58, %59 : vector<4x16xi32>
    %61 = arith.sitofp %60 : vector<4x16xi32> to vector<4x16xf32>
    %cst_13 = arith.constant 2.000000e+00 : f32
    %62 = vector.broadcast %cst_13 : f32 to vector<4x16xf32>
    %63 = arith.mulf %62, %61 : vector<4x16xf32>
    %cst_14 = arith.constant 1.000000e+00 : f32
    %64 = vector.broadcast %cst_14 : f32 to vector<4x16xf32>
    %65 = arith.subf %64, %63 : vector<4x16xf32>
    %c2_i32_15 = arith.constant 2 : i32
    %66 = vector.broadcast %c2_i32_15 : i32 to vector<4x16xi32>
    %67 = arith.cmpi eq, %31, %66 : vector<4x16xi32>
    %68 = arith.select %67, %65, %56 : vector<4x16xi1>, vector<4x16xf32>
    %c0_i32_16 = arith.constant 0 : i32
    %69 = vector.broadcast %c0_i32_16 : i32 to vector<4x16xi32>
    %70 = arith.shrsi %30, %69 : vector<4x16xi32>
    %c1_i32_17 = arith.constant 1 : i32
    %71 = vector.broadcast %c1_i32_17 : i32 to vector<4x16xi32>
    %72 = arith.andi %70, %71 : vector<4x16xi32>
    %73 = arith.sitofp %72 : vector<4x16xi32> to vector<4x16xf32>
    %cst_18 = arith.constant 2.000000e+00 : f32
    %74 = vector.broadcast %cst_18 : f32 to vector<4x16xf32>
    %75 = arith.mulf %74, %73 : vector<4x16xf32>
    %cst_19 = arith.constant 1.000000e+00 : f32
    %76 = vector.broadcast %cst_19 : f32 to vector<4x16xf32>
    %77 = arith.subf %76, %75 : vector<4x16xf32>
    %c3_i32_20 = arith.constant 3 : i32
    %78 = vector.broadcast %c3_i32_20 : i32 to vector<4x16xi32>
    %79 = arith.cmpi eq, %31, %78 : vector<4x16xi32>
    %80 = arith.select %79, %77, %68 : vector<4x16xi1>, vector<4x16xf32>
    %cst_21 = arith.constant dense<0.000000e+00> : vector<4x256xf32>
    %81 = tpu.matmul %80, %29, %cst_21 {dimension_numbers = #tpu.dot_dimension_numbers<[1], [0], [0], [1], [0, 0, 1, 1], [], []>} : vector<4x16xf32>, vector<16x256xf32>, vector<4x256xf32> -> vector<4x256xf32>
    %c0_22 = arith.constant 0 : index
    %c0_23 = arith.constant 0 : index
    %c0_24 = arith.constant 0 : index
    %82 = vector.load %arg3[%c0_22, %c0_23, %c0_24] : memref<1x4x256xf32, #tpu.memory_space<vmem>>, vector<1x4x256xf32>
    %83 = vector.shape_cast %82 : vector<1x4x256xf32> to vector<4x256xf32>
    %84 = vector.shape_cast %81 : vector<4x256xf32> to vector<1x4x256xf32>
    tpu.vector_store %arg3[%c0_22, %c0_23, %c0_24], %84 {strides = array<i32>} : memref<1x4x256xf32, #tpu.memory_space<vmem>>, vector<1x4x256xf32>,
    return
  }
  func.func @transform_0(%arg0: i32) -> (i32, i32, i32) {
    %c0_i32 = arith.constant 0 : i32
    %c0_i32_0 = arith.constant 0 : i32
    %c0_i32_1 = arith.constant 0 : i32
    return %arg0, %c0_i32, %c0_i32_0 : i32, i32, i32
  }
  func.func @transform_1(%arg0: i32) -> (i32, i32) {
    %c0_i32 = arith.constant 0 : i32
    %c0_i32_0 = arith.constant 0 : i32
    %c0_i32_1 = arith.constant 0 : i32
    return %c0_i32, %c0_i32_0 : i32, i32
  }
  func.func @transform_2(%arg0: i32) -> (i32, i32, i32) {
    %c0_i32 = arith.constant 0 : i32
    %c0_i32_0 = arith.constant 0 : i32
    %c0_i32_1 = arith.constant 0 : i32
    return %arg0, %c0_i32, %c0_i32_0 : i32, i32, i32
  }
}

</mosaic_0001>

<llo_original>
// kernel: quantum_layer_forward.1
$region0: #{quantum_layer_forward.1}
  #allocation0 [shape = 'u32[]', space=smem, size = 0x4, offset = 0x4, fixed_abs, tag = 'smem constant byte address 0x4 - core index']
  #allocation1 [shape = 'u32[144,128]{1,0:T(1,128)}', space=vmem, size = 0x12000, scoped, tag = 'internal scratch']
  %s0 = inlined_call_operand.vmem [shape: f32[4,96,256], index: 0, kind: input, shape index: {}]
  %s1 = inlined_call_operand.vmem [shape: f32[64,32], index: 1, kind: input, shape index: {}]
  %s2 = inlined_call_operand.hbm [shape: f32[4,4,256], index: 2, kind: output, shape index: {}]
  %s3 = sld [smem:[#allocation0]]
  $region41: #{quantum_layer_forward.1} parent=0
    _
  %s5 = ssub.s32 1, %s3
  %s6 = scalar_select 0, %s5, %s3
  $region1: #{quantum_layer_forward.1} parent=0
    #allocation2 [shape = 'u8[8192]{0}', space=vmem, size = 0x2000, scoped, tag = 'output window, operand 0']
    #allocation3 [shape = 's32[2]{0}', space=sflag, size = 0x8, scoped, tag = 'scoped memory for quantum_layer_forward.1']
    %7 = vsyncpa [#allocation3], 0
    %s8 = scalar_lea.sflag [#allocation3], 1
    %9 = vsyncpa %s8, 0
    loop: start=0, step=1, limit=6
    $region2: #{quantum_layer_forward.1} parent=1 // loop_pre_header
      _
    $region3: #{quantum_layer_forward.1} parent=1 // loop_header
      %s11 = sphi 0, %s15
      %p12 = scmp.ge.s32.totalorder %s11, 6
      %s21 = sphi 0, %s23
      %s24 = sphi 0, %s21
      %s25 = sphi 0, %s24
      %s41 = sphi 0, %s25
      %s45 = sphi 0, %s45
      %s47 = sphi 0, %s45
      %s48 = sphi 0, %s47
      %s62 = sphi 0, %s48
      %s68 = sphi 0, %s70
      %s71 = sphi 0, %s68
      %s72 = sphi 0, %s71
      %s88 = sphi 0, %s72
    $region4: #{quantum_layer_forward.1} parent=1 // loop_header_branch
      %14 = sbr.rel (%p12) target = $region8
    $region5: #{quantum_layer_forward.1} parent=1 // loop_body
      %s16 = ssub.s32 %s11, 1
      %s17 = ssub.s32 %s11, 2
      %s18 = sadd.s32 %s11, 1
      %s19 = ssub.s32 %s11, %s18
      %p20 = scmp.eq.s32.totalorder %s19, 0
      %s22 = sadd.s32 %s21, 1
      %s23 = scalar_select %p20, %s21, %s22
      %p26 = pneg %p20
      %p27 = scmp.eq.s32.totalorder %s11, 3
      %p28 = por %p26, %p27
      %p29 = scmp.ne.s32.totalorder %s21, %s24
      %p30 = scmp.eq.s32.totalorder %s11, 0
      %p31 = por %p29, %p30
      %p32 = scmp.ne.s32.totalorder %s21, %s24
      %p33 = scmp.eq.s32.totalorder %s16, 3
      %p34 = por %p32, %p33
      %p35 = scmp.ne.s32.totalorder %s24, %s25
      %p36 = scmp.eq.s32.totalorder %s16, 0
      %p37 = por %p35, %p36
      %p38 = scmp.ne.s32.totalorder %s24, %s25
      %p39 = scmp.eq.s32.totalorder %s17, 3
      %p40 = por %p38, %p39
      %p42 = scmp.ne.s32.totalorder %s25, %s41
      %p43 = scmp.eq.s32.totalorder %s17, 0
      %p44 = por %p42, %p43
      %s46 = sadd.s32 %s45, 1
      %p49 = scmp.eq.s32.totalorder %s11, 3
      %p50 = scmp.ne.s32.totalorder %s45, %s47
      %p51 = scmp.eq.s32.totalorder %s11, 0
      %p52 = por %p50, %p51
      %p53 = scmp.ne.s32.totalorder %s45, %s47
      %p54 = scmp.eq.s32.totalorder %s16, 3
      %p55 = por %p53, %p54
      %p56 = scmp.ne.s32.totalorder %s47, %s48
      %p57 = scmp.eq.s32.totalorder %s16, 0
      %p58 = por %p56, %p57
      %p59 = scmp.ne.s32.totalorder %s47, %s48
      %p60 = scmp.eq.s32.totalorder %s17, 3
      %p61 = por %p59, %p60
      %p63 = scmp.ne.s32.totalorder %s48, %s62
      %p64 = scmp.eq.s32.totalorder %s17, 0
      %p65 = por %p63, %p64
      %s66 = ssub.s32 %s11, %s18
      %p67 = scmp.eq.s32.totalorder %s66, 0
      %s69 = sadd.s32 %s68, 1
      %s70 = scalar_select %p67, %s68, %s69
      %p73 = pneg %p67
      %p74 = scmp.eq.s32.totalorder %s11, 3
      %p75 = por %p73, %p74
      %p76 = scmp.ne.s32.totalorder %s68, %s71
      %p77 = scmp.eq.s32.totalorder %s11, 0
      %p78 = por %p76, %p77
      %p79 = scmp.ne.s32.totalorder %s68, %s71
      %p80 = scmp.eq.s32.totalorder %s16, 3
      %p81 = por %p79, %p80
      %p82 = scmp.ne.s32.totalorder %s71, %s72
      %p83 = scmp.eq.s32.totalorder %s16, 0
      %p84 = por %p82, %p83
      %p85 = scmp.ne.s32.totalorder %s71, %s72
      %p86 = scmp.eq.s32.totalorder %s17, 3
      %p87 = por %p85, %p86
      %p89 = scmp.ne.s32.totalorder %s72, %s88
      %p90 = scmp.eq.s32.totalorder %s17, 0
      %p91 = por %p89, %p90
      %p92 = scmp.le.s32.totalorder 1, %s11
      %p93 = scmp.lt.s32.totalorder %s11, 5
      %p94 = pnand %p92, %p93
      %p95 = pneg %p94
      // Predicated region
      $region9: #{quantum_layer_forward.1} parent=5 // pred_check
        _
      $region10: #{quantum_layer_forward.1} parent=5 // pred_check_branch
        %97 = sbr.rel (%p94) target = $region12
      $region11: #{quantum_layer_forward.1} parent=5 // pred_region
        %s98 = ssub.s32 %s11, 1
        // Predicated region
        $region13: #{quantum_layer_forward.1} parent=11 // pred_check
          %p99 = pneg %p58
        $region14: #{quantum_layer_forward.1} parent=11 // pred_check_branch
          %101 = sbr.rel (%p99) target = $region16
        $region15: #{quantum_layer_forward.1} parent=11 // pred_region
          _
        $region16: #{quantum_layer_forward.1} parent=11 // pred_fallthru
          _
      $region12: #{quantum_layer_forward.1} parent=5 // pred_fallthru
        _
      %p102 = scmp.lt.s32.totalorder %s11, 4
      // Predicated region
      $region17: #{quantum_layer_forward.1} parent=5 // pred_check
        %p103 = pneg %p102
      $region18: #{quantum_layer_forward.1} parent=5 // pred_check_branch
        %105 = sbr.rel (%p103) target = $region20
      $region19: #{quantum_layer_forward.1} parent=5 // pred_region
        // Predicated region
        $region21: #{quantum_layer_forward.1} parent=19 // pred_check
          %p106 = pneg %p31
        $region22: #{quantum_layer_forward.1} parent=19 // pred_check_branch
          %108 = sbr.rel (%p106) target = $region24
        $region23: #{quantum_layer_forward.1} parent=19 // pred_region
          %p109 = scmp.lt.s32.totalorder %s11, 3
          %s110 = scalar_select %p109, %s11, 3
          %s111 = smul.addr %s110, 24
          %s112 = smul.addr %s111, 8
          %s113 = scalar_lea.vmem %s0, %s112
        $region24: #{quantum_layer_forward.1} parent=19 // pred_fallthru
          _
      $region20: #{quantum_layer_forward.1} parent=5 // pred_fallthru
        _
      %p114 = scmp.le.s32.totalorder 1, %s11
      %p115 = scmp.lt.s32.totalorder %s11, 5
      %p116 = pnand %p114, %p115
      %p117 = pneg %p116
      // Predicated region
      $region25: #{quantum_layer_forward.1} parent=5 // pred_check
        _
      $region26: #{quantum_layer_forward.1} parent=5 // pred_check_branch
        %119 = sbr.rel (%p116) target = $region28
      $region27: #{quantum_layer_forward.1} parent=5 // pred_region
        %s120 = ssub.s32 %s11, 1
        %p121 = scmp.lt.s32.totalorder %s16, 3
        %s122 = scalar_select %p121, %s16, 3
        %s123 = smul.addr %s122, 24
        %s124 = smul.addr %s123, 8
        %s125 = scalar_lea.vmem %s0, %s124
        %p126 = pneg %p37
        %p127 = pneg %p34
        %p128 = pneg %p58
        %p129 = pneg %p55
        %p130 = pneg %p84
        %p131 = pneg %p81
        %s132 = sand.u32 %s71, 1
        %s133 = scalar_lea.sflag [#allocation3], %s132
        %s134 = sand.u32 %s71, 1
        %s135 = smul.addr %s134, 8
        %s136 = scalar_lea.vmem [#allocation2], %s135
        %p137 = scmp.lt.s32.totalorder %s16, 3
        %s138 = scalar_select %p137, %s16, 3
        %s139 = smul.addr %s138, 24
        %s140 = smul.addr %s139, 8
        %s141 = scalar_lea.vmem %s0, %s140
        %v142 = vld [vmem:[%s141] sm:$0xff]
        %v143 = vld [vmem:[%s141 + $0x8] sm:$0xff]
        %v144 = vld [vmem:[%s141 + $0x10] sm:$0xff]
        %v145 = vld [vmem:[%s141 + $0x18] sm:$0xff]
        %v146 = vld [vmem:[%s141 + $0x20] sm:$0xff]
        %v147 = vld [vmem:[%s141 + $0x28] sm:$0xff]
        %v148 = vld [vmem:[%s141 + $0x30] sm:$0xff]
        %v149 = vld [vmem:[%s141 + $0x38] sm:$0xff]
        %v150 = vld [vmem:[%s141 + $0x40] sm:$0xff]
        %v151 = vld [vmem:[%s141 + $0x48] sm:$0xff]
        %v152 = vld [vmem:[%s141 + $0x50] sm:$0xff]
        %v153 = vld [vmem:[%s141 + $0x58] sm:$0xff]
        %v154 = vld [vmem:[%s141 + $0x60] sm:$0xff]
        %v155 = vld [vmem:[%s141 + $0x68] sm:$0xff]
        %v156 = vld [vmem:[%s141 + $0x70] sm:$0xff]
        %v157 = vld [vmem:[%s141 + $0x78] sm:$0xff]
        %v158 = vld [vmem:[%s141 + $0x80] sm:$0xff]
        %v159 = vld [vmem:[%s141 + $0x88] sm:$0xff]
        %v160 = vld [vmem:[%s141 + $0x90] sm:$0xff]
        %v161 = vld [vmem:[%s141 + $0x98] sm:$0xff]
        %v162 = vld [vmem:[%s141 + $0xa0] sm:$0xff]
        %v163 = vld [vmem:[%s141 + $0xa8] sm:$0xff]
        %v164 = vld [vmem:[%s141 + $0xb0] sm:$0xff]
        %v165 = vld [vmem:[%s141 + $0xb8] sm:$0xff]
        %v166 = vld [vmem:[%s1] sm:$0xff]
        %v167 = vld [vmem:[%s1 + $0x8] sm:$0xff]
        %v168 = vld [vmem:[%s1 + $0x10] sm:$0xff]
        %v169 = vld [vmem:[%s1 + $0x18] sm:$0xff]
        %v170 = vld [vmem:[%s1 + $0x20] sm:$0xff]
        %v171 = vld [vmem:[%s1 + $0x28] sm:$0xff]
        %v172 = vld [vmem:[%s1 + $0x30] sm:$0xff]
        %v173 = vld [vmem:[%s1 + $0x38] sm:$0xff]
        %vm174 = vcmask 261120
        %v176 = vsel %vm174, %v166, 0
        %v179 = vsel %vm174, %v167, 0
        %v182 = vsel %vm174, %v168, 0
        %v185 = vsel %vm174, %v169, 0
        %v188 = vsel %vm174, %v170, 0
        %v191 = vsel %vm174, %v171, 0
        %v194 = vsel %vm174, %v172, 0
        %v197 = vsel %vm174, %v173, 0
        %199 = vmatprep.subr.mxu0 0.0
        %200 = vmatpush1.msra.mxu0 0.0
        %201 = vmatprep.subr.mxu0 0.0
        %202 = vmatpush1.msra.mxu0 0.0
        %203 = vmatprep.subr.mxu0 0.0
        %204 = vmatpush1.msra.mxu0 0.0
        %205 = vmatprep.subr.mxu0 0.0
        %206 = vmatpush1.msra.mxu0 0.0
        %207 = vmatprep.subr.mxu0 0.0
        %208 = vmatpush1.msra.mxu0 0.0
        %209 = vmatprep.subr.mxu0 0.0
        %210 = vmatpush1.msra.mxu0 0.0
        %211 = vmatprep.subr.mxu0 0.0
        %212 = vmatpush1.msra.mxu0 0.0
        %213 = vmatprep.subr.mxu0 0.0
        %214 = vmatpush1.msra.mxu0 0.0
        %215 = vmatprep.subr.mxu0 0.0
        %216 = vmatpush1.msra.mxu0 0.0
        %217 = vmatprep.subr.mxu0 0.0
        %218 = vmatpush1.msra.mxu0 0.0
        %219 = vmatprep.subr.mxu0 0.0
        %220 = vmatpush1.msra.mxu0 0.0
        %221 = vmatprep.subr.mxu0 0.0
        %222 = vmatpush1.msra.mxu0 0.0
        %223 = vmatprep.subr.mxu0 %v149
        %224 = vmatpush1.msra.mxu0 %v148
        %225 = vmatprep.subr.mxu0 %v147
        %226 = vmatpush1.msra.mxu0 %v146
        %227 = vmatprep.subr.mxu0 %v145
        %228 = vmatpush1.msra.mxu0 %v144
        %229 = vmatprep.subr.mxu0 %v143
        %230 = vmatpush1.msra.mxu0 %v142
        %231 = vmatprep.subr.mxu0 0.0
        %232 = vmatpush2.msra.mxu0 0.0
        %233 = vmatprep.subr.mxu0 0.0
        %234 = vmatpush2.msra.mxu0 0.0
        %235 = vmatprep.subr.mxu0 0.0
        %236 = vmatpush2.msra.mxu0 0.0
        %237 = vmatprep.subr.mxu0 0.0
        %238 = vmatpush2.msra.mxu0 0.0
        %239 = vmatprep.subr.mxu0 0.0
        %240 = vmatpush2.msra.mxu0 0.0
        %241 = vmatprep.subr.mxu0 0.0
        %242 = vmatpush2.msra.mxu0 0.0
        %243 = vmatprep.subr.mxu0 0.0
        %244 = vmatpush2.msra.mxu0 0.0
        %245 = vmatprep.subr.mxu0 0.0
        %246 = vmatpush2.msra.mxu0 0.0
        %247 = vmatprep.subr.mxu0 0.0
        %248 = vmatpush2.msra.mxu0 0.0
        %249 = vmatprep.subr.mxu0 0.0
        %250 = vmatpush2.msra.mxu0 0.0
        %251 = vmatprep.subr.mxu0 0.0
        %252 = vmatpush2.msra.mxu0 0.0
        %253 = vmatprep.subr.mxu0 0.0
        %254 = vmatpush2.msra.mxu0 0.0
        %255 = vmatprep.subr.mxu0 0.0
        %256 = vmatpush2.msra.mxu0 0.0
        %257 = vmatprep.subr.mxu0 0.0
        %258 = vmatpush2.msra.mxu0 0.0
        %259 = vmatprep.subr.mxu0 0.0
        %260 = vmatpush2.msra.mxu0 0.0
        %261 = vmatprep.subr.mxu0 0.0
        %262 = vmatpush2.msra.mxu0 0.0
        %263 = vmatprep.mubr.f32.mxu0 0.0
        %264 = vmatmul.mubr.f32.gmra.mxu0 %v176
        %v265 = vpop.f32.mrf.mxu0
        %v266 = vadd.f32 0.0, %v265
        %v267 = vpop.f32.mrf.mxu0
        %v268 = vadd.f32 0.0, %v267
        %269 = vmatprep.mubr.f32.mxu0 0.0
        %270 = vmatmul.mubr.f32.gmra.mxu0 %v179
        %v271 = vpop.f32.mrf.mxu0
        %v272 = vadd.f32 0.0, %v271
        %v273 = vpop.f32.mrf.mxu0
        %v274 = vadd.f32 0.0, %v273
        %275 = vmatprep.mubr.f32.mxu0 0.0
        %276 = vmatmul.mubr.f32.gmra.mxu0 %v182
        %v277 = vpop.f32.mrf.mxu0
        %v278 = vadd.f32 0.0, %v277
        %v279 = vpop.f32.mrf.mxu0
        %v280 = vadd.f32 0.0, %v279
        %281 = vmatprep.mubr.f32.mxu0 0.0
        %282 = vmatmul.mubr.f32.gmra.mxu0 %v185
        %v283 = vpop.f32.mrf.mxu0
        %v284 = vadd.f32 0.0, %v283
        %v285 = vpop.f32.mrf.mxu0
        %v286 = vadd.f32 0.0, %v285
        %287 = vmatprep.mubr.f32.mxu0 0.0
        %288 = vmatmul.mubr.f32.gmra.mxu0 %v188
        %v289 = vpop.f32.mrf.mxu0
        %v290 = vadd.f32 0.0, %v289
        %v291 = vpop.f32.mrf.mxu0
        %v292 = vadd.f32 0.0, %v291
        %293 = vmatprep.mubr.f32.mxu0 0.0
        %294 = vmatmul.mubr.f32.gmra.mxu0 %v191
        %v295 = vpop.f32.mrf.mxu0
        %v296 = vadd.f32 0.0, %v295
        %v297 = vpop.f32.mrf.mxu0
        %v298 = vadd.f32 0.0, %v297
        %299 = vmatprep.mubr.f32.mxu0 0.0
        %300 = vmatmul.mubr.f32.gmra.mxu0 %v194
        %v301 = vpop.f32.mrf.mxu0
        %v302 = vadd.f32 0.0, %v301
        %v303 = vpop.f32.mrf.mxu0
        %v304 = vadd.f32 0.0, %v303
        %305 = vmatprep.mubr.f32.mxu0 0.0
        %306 = vmatmul.mubr.f32.gmra.mxu0 %v197
        %v307 = vpop.f32.mrf.mxu0
        %v308 = vadd.f32 0.0, %v307
        %v309 = vpop.f32.mrf.mxu0
        %v310 = vadd.f32 0.0, %v309
        %311 = vdwg.mxu0
        %v312 = vmul.f32 %v150, %v266
        %v313 = vmul.f32 %v151, %v268
        %v314 = vmul.f32 %v152, %v272
        %v315 = vmul.f32 %v153, %v274
        %v316 = vmul.f32 %v154, %v278
        %v317 = vmul.f32 %v155, %v280
        %v318 = vmul.f32 %v156, %v284
        %v319 = vmul.f32 %v157, %v286
        %v320 = vsub.f32 %v312, %v316
        %v321 = vsub.f32 %v313, %v317
        %v322 = vsub.f32 %v314, %v318
        %v323 = vsub.f32 %v315, %v319
        %v324 = vmul.f32 %v158, %v290
        %v325 = vmul.f32 %v159, %v292
        %v326 = vmul.f32 %v160, %v296
        %v327 = vmul.f32 %v161, %v298
        %v328 = vadd.f32 %v320, %v324
        %v329 = vadd.f32 %v321, %v325
        %v330 = vadd.f32 %v322, %v326
        %v331 = vadd.f32 %v323, %v327
        %v332 = vmul.f32 %v162, %v302
        %v333 = vmul.f32 %v163, %v304
        %v334 = vmul.f32 %v164, %v308
        %v335 = vmul.f32 %v165, %v310
        %v336 = vsub.f32 %v328, %v332
        %v337 = vsub.f32 %v329, %v333
        %v338 = vsub.f32 %v330, %v334
        %v339 = vsub.f32 %v331, %v335
        %v340 = vmul.f32 %v150, %v278
        %v341 = vmul.f32 %v151, %v280
        %v342 = vmul.f32 %v152, %v284
        %v343 = vmul.f32 %v153, %v286
        %v344 = vmul.f32 %v154, %v266
        %v345 = vmul.f32 %v155, %v268
        %v346 = vmul.f32 %v156, %v272
        %v347 = vmul.f32 %v157, %v274
        %v348 = vadd.f32 %v340, %v344
        %v349 = vadd.f32 %v341, %v345
        %v350 = vadd.f32 %v342, %v346
        %v351 = vadd.f32 %v343, %v347
        %v352 = vmul.f32 %v158, %v302
        %v353 = vmul.f32 %v159, %v304
        %v354 = vmul.f32 %v160, %v308
        %v355 = vmul.f32 %v161, %v310
        %v356 = vadd.f32 %v348, %v352
        %v357 = vadd.f32 %v349, %v353
        %v358 = vadd.f32 %v350, %v354
        %v359 = vadd.f32 %v351, %v355
        %v360 = vmul.f32 %v162, %v290
        %v361 = vmul.f32 %v163, %v292
        %v362 = vmul.f32 %v164, %v296
        %v363 = vmul.f32 %v165, %v298
        %v364 = vadd.f32 %v356, %v360
        %v365 = vadd.f32 %v357, %v361
        %v366 = vadd.f32 %v358, %v362
        %v367 = vadd.f32 %v359, %v363
        %v368 = vmul.f32 %v336, %v336
        %v369 = vmul.f32 %v337, %v337
        %v370 = vmul.f32 %v338, %v338
        %v371 = vmul.f32 %v339, %v339
        %v372 = vmul.f32 %v364, %v364
        %v373 = vmul.f32 %v365, %v365
        %v374 = vmul.f32 %v366, %v366
        %v375 = vmul.f32 %v367, %v367
        %v376 = vadd.f32 %v368, %v372
        %v377 = vadd.f32 %v369, %v373
        %v378 = vadd.f32 %v370, %v374
        %v379 = vadd.f32 %v371, %v375
        %v380 = vlaneseq
        %v381 = vand.u32 %v380, 127
        %v382 = vlaneseq
        %v383 = vshrl.u32 %v382, 7
        %v384 = vshra.s32 %v381, 3
        %v385 = vand.u32 %v384, 1
        %v386 = vcvt.s32.f32 %v385
        %v387 = vmul.f32 %v386, 2.0
        %v388 = vsub.f32 1.0, %v387
        %vm389 = vcmp.eq.s32.totalorder %v383, 0
        %v390 = vsel %vm389, %v388, 0.0
        %v391 = vshra.s32 %v381, 2
        %v392 = vand.u32 %v391, 1
        %v393 = vcvt.s32.f32 %v392
        %v394 = vmul.f32 %v393, 2.0
        %v395 = vsub.f32 1.0, %v394
        %vm396 = vcmp.eq.s32.totalorder %v383, 1
        %v397 = vsel %vm396, %v395, %v390
        %v398 = vshra.s32 %v381, 1
        %v399 = vand.u32 %v398, 1
        %v400 = vcvt.s32.f32 %v399
        %v401 = vmul.f32 %v400, 2.0
        %v402 = vsub.f32 1.0, %v401
        %vm403 = vcmp.eq.s32.totalorder %v383, 2
        %v404 = vsel %vm403, %v402, %v397
        %v405 = vand.u32 %v381, 1
        %v406 = vcvt.s32.f32 %v405
        %v407 = vmul.f32 %v406, 2.0
        %v408 = vsub.f32 1.0, %v407
        %vm409 = vcmp.eq.s32.totalorder %v383, 3
        %v410 = vsel %vm409, %v408, %v404
        %vm411 = vcmask 130048
        %v413 = vsel %vm411, %v410, 0
        %415 = vmatprep.subr.mxu0 0.0
        %416 = vmatpush1.msra.mxu0 0.0
        %417 = vmatprep.subr.mxu0 0.0
        %418 = vmatpush1.msra.mxu0 0.0
        %419 = vmatprep.subr.mxu0 0.0
        %420 = vmatpush1.msra.mxu0 0.0
        %421 = vmatprep.subr.mxu0 0.0
        %422 = vmatpush1.msra.mxu0 0.0
        %423 = vmatprep.subr.mxu0 0.0
        %424 = vmatpush1.msra.mxu0 0.0
        %425 = vmatprep.subr.mxu0 0.0
        %426 = vmatpush1.msra.mxu0 0.0
        %427 = vmatprep.subr.mxu0 0.0
        %428 = vmatpush1.msra.mxu0 0.0
        %429 = vmatprep.subr.mxu0 0.0
        %430 = vmatpush1.msra.mxu0 0.0
        %431 = vmatprep.subr.mxu0 0.0
        %432 = vmatpush1.msra.mxu0 0.0
        %433 = vmatprep.subr.mxu0 0.0
        %434 = vmatpush1.msra.mxu0 0.0
        %435 = vmatprep.subr.mxu0 0.0
        %436 = vmatpush1.msra.mxu0 0.0
        %437 = vmatprep.subr.mxu0 0.0
        %438 = vmatpush1.msra.mxu0 0.0
        %439 = vmatprep.subr.mxu0 0.0
        %440 = vmatpush1.msra.mxu0 0.0
        %441 = vmatprep.subr.mxu0 0.0
        %442 = vmatpush1.msra.mxu0 0.0
        %443 = vmatprep.subr.mxu0 %v379
        %444 = vmatpush1.msra.mxu0 %v378
        %445 = vmatprep.subr.mxu0 %v377
        %446 = vmatpush1.msra.mxu0 %v376
        %447 = vmatprep.subr.mxu0 0.0
        %448 = vmatpush2.msra.mxu0 0.0
        %449 = vmatprep.subr.mxu0 0.0
        %450 = vmatpush2.msra.mxu0 0.0
        %451 = vmatprep.subr.mxu0 0.0
        %452 = vmatpush2.msra.mxu0 0.0
        %453 = vmatprep.subr.mxu0 0.0
        %454 = vmatpush2.msra.mxu0 0.0
        %455 = vmatprep.subr.mxu0 0.0
        %456 = vmatpush2.msra.mxu0 0.0
        %457 = vmatprep.subr.mxu0 0.0
        %458 = vmatpush2.msra.mxu0 0.0
        %459 = vmatprep.subr.mxu0 0.0
        %460 = vmatpush2.msra.mxu0 0.0
        %461 = vmatprep.subr.mxu0 0.0
        %462 = vmatpush2.msra.mxu0 0.0
        %463 = vmatprep.subr.mxu0 0.0
        %464 = vmatpush2.msra.mxu0 0.0
        %465 = vmatprep.subr.mxu0 0.0
        %466 = vmatpush2.msra.mxu0 0.0
        %467 = vmatprep.subr.mxu0 0.0
        %468 = vmatpush2.msra.mxu0 0.0
        %469 = vmatprep.subr.mxu0 0.0
        %470 = vmatpush2.msra.mxu0 0.0
        %471 = vmatprep.subr.mxu0 0.0
        %472 = vmatpush2.msra.mxu0 0.0
        %473 = vmatprep.subr.mxu0 0.0
        %474 = vmatpush2.msra.mxu0 0.0
        %475 = vmatprep.subr.mxu0 0.0
        %476 = vmatpush2.msra.mxu0 0.0
        %477 = vmatprep.subr.mxu0 0.0
        %478 = vmatpush2.msra.mxu0 0.0
        %479 = vmatprep.mubr.f32.mxu0 0.0
        %480 = vmatmul.mubr.f32.gmra.mxu0 %v413
        %v481 = vpop.f32.mrf.mxu0
        %v482 = vadd.f32 0.0, %v481
        %v483 = vpop.f32.mrf.mxu0
        %v484 = vadd.f32 0.0, %v483
        %485 = vdwg.mxu0
        %v488 = vcombine.low %v482, %v484
        %490 = vst [vmem:[%s136] sm:$0xff] %v488
        %s491 = sand.u32 %s71, 1
        %s492 = scalar_lea.sflag [#allocation3], %s491
        %s493 = sand.u32 %s71, 1
        %s494 = smul.addr %s493, 8
        %s495 = scalar_lea.vmem [#allocation2], %s494
        // Predicated region
        $region29: #{quantum_layer_forward.1} parent=27 // pred_check
          %p496 = pneg %p81
        $region30: #{quantum_layer_forward.1} parent=27 // pred_check_branch
          %498 = sbr.rel (%p496) target = $region32
        $region31: #{quantum_layer_forward.1} parent=27 // pred_region
          %s500 = ssub.s32 128, 128
          %501 = vsyncadd %s492, %s500
          %s502 = smul.addr %s16, 2
          %s503 = smul.addr %s502, 64
          %s504 = scalar_lea.hbm %s2, %s503
          %s506 = sshll.u32 %s495, 4
          %s507 = int_to_ptr.vmem [resolvable:$true] %s506
          %509 = dma.vmem_to_hbm [thread:$0]  %s507, 128, %s504, %s492
        $region32: #{quantum_layer_forward.1} parent=27 // pred_fallthru
          _
      $region28: #{quantum_layer_forward.1} parent=5 // pred_fallthru
        _
      %p510 = scmp.le.s32.totalorder 2, %s11
      // Predicated region
      $region33: #{quantum_layer_forward.1} parent=5 // pred_check
        %p511 = pneg %p510
      $region34: #{quantum_layer_forward.1} parent=5 // pred_check_branch
        %513 = sbr.rel (%p511) target = $region36
      $region35: #{quantum_layer_forward.1} parent=5 // pred_region
        %s514 = ssub.s32 %s11, 2
        // Predicated region
        $region37: #{quantum_layer_forward.1} parent=35 // pred_check
          %p515 = pneg %p87
        $region38: #{quantum_layer_forward.1} parent=35 // pred_check_branch
          %517 = sbr.rel (%p515) target = $region40
        $region39: #{quantum_layer_forward.1} parent=35 // pred_region
          %s518 = sand.u32 %s72, 1
          %s519 = scalar_lea.sflag [#allocation3], %s518
          %s520 = sand.u32 %s72, 1
          %s521 = smul.addr %s520, 8
          %s522 = scalar_lea.vmem [#allocation2], %s521
          %523 = dma.done %s519, 128
        $region40: #{quantum_layer_forward.1} parent=35 // pred_fallthru
          _
      $region36: #{quantum_layer_forward.1} parent=5 // pred_fallthru
        _
    $region6: #{quantum_layer_forward.1} parent=1 // loop_footer
      %s15 = sadd.s32 1, %s11
    $region7: #{quantum_layer_forward.1} parent=1 // loop_footer_branch
      %10 = sbr.rel target = $region3
    $region8: #{quantum_layer_forward.1} parent=1 // loop_exit
      _
    %524 = vsyncpa [#allocation3], 1
    %s525 = scalar_lea.sflag [#allocation3], 1
    %526 = vsyncpa %s525, 1

</llo_original>
